<compile_context>
chip_gen: v5e
topology: v5e:2x2
jax: 0.10.0
libtpu: 0.0.40
codegen_flags: <defaults>
</compile_context>

<pallas_src>
import numpy as np
import jax
import jax.numpy as jnp
from jax import lax
from jax.experimental import pallas as pl
from jax.experimental.pallas import tpu as pltpu

BN_EPS = 1e-5
_VMEM_LIMIT = 32 * 1024 * 1024  # raise v5e's 16 MiB scoped default; safe on v6e/v7x


def _pick_tile(hw, w):
    """Spatial tile size (flattened H*W positions) per grid step.

    Must divide H*W, cover whole row pairs (multiple of 2*W) and keep both the
    high-res tile (tile) and the low-res tile (tile // 4) lane aligned.  Small
    images are processed whole-image per grid step."""
    max_tile = 8192
    if hw <= max_tile:
        return hw
    best = None
    t = 2 * w
    while t <= max_tile:
        if hw % t == 0 and t % 512 == 0:
            best = t
        t += 2 * w
    return best if best is not None else hw


def _upsample_matrix(tile_p, w):
    """(tile_p//4, tile_p) 0/1 matrix implementing nearest-neighbour 2x spatial
    upsampling of a row-major flattened low-res tile onto the row-major
    flattened high-res tile.  Applied on the MXU inside the kernel, so the
    upsampled low branch never touches HBM."""
    wl = w // 2
    low_p = tile_p // 4
    q = np.arange(tile_p)
    parent = (q // w // 2) * wl + (q % w) // 2        # low-res flat parent of q
    u = (parent[None, :] == np.arange(low_p)[:, None]).astype(np.float32)
    return jnp.asarray(u)


def _octave_y(xh, xl, wh, wl, up):
    """y[Co, tileP] = conv_h2h(x_h) + upsample2x(conv_l2h(x_l)) for one tile."""
    y_h = jnp.dot(wh, xh, preferred_element_type=jnp.float32)        # (Co, tileP)
    y_l = jnp.dot(wl, xl, preferred_element_type=jnp.float32)        # (Co, tileP//4)
    return y_h + jnp.dot(y_l, up, preferred_element_type=jnp.float32)


def _stats_kernel(xh_ref, xl_ref, wh_ref, wl_ref, up_ref, sum_ref, sq_ref):
    # Pass 1: accumulate global per-channel sum / sum-of-squares (training-mode
    # BN statistics over N*H*W).  Accumulator outputs stay VMEM-resident across
    # the whole grid (constant out index_map + "arbitrary" semantics).
    @pl.when((pl.program_id(0) == 0) & (pl.program_id(1) == 0))
    def _init():
        sum_ref[...] = jnp.zeros_like(sum_ref)
        sq_ref[...] = jnp.zeros_like(sq_ref)

    y = _octave_y(xh_ref[0], xl_ref[0], wh_ref[...], wl_ref[...], up_ref[...])
    sum_ref[...] += jnp.sum(y, axis=1, keepdims=True)
    sq_ref[...] += jnp.sum(y * y, axis=1, keepdims=True)


def _norm_kernel(xh_ref, xl_ref, wh_ref, wl_ref, up_ref, scale_ref, bias_ref, o_ref):
    # Pass 2: recompute y for the tile (cheaper than writing/re-reading a full
    # f32 intermediate) and apply the folded BN affine + ReLU: one FMA + max.
    y = _octave_y(xh_ref[0], xl_ref[0], wh_ref[...], wl_ref[...], up_ref[...])
    o_ref[0] = jnp.maximum(y * scale_ref[...] + bias_ref[...], 0.0)


def conv_bn_act_a0(x_h, x_l, w_h2h, w_l2h, gamma, beta):
    """Forward of Conv_BN_ACTa0.

    x_h   : (N, C_h_in, H, W)        NCHW high-frequency branch
    x_l   : (N, C_l_in, H//2, W//2)  NCHW low-frequency branch
    w_h2h : (C_out_h, C_h_in, 1, 1)  conv_h2h weight (PyTorch layout)
    w_l2h : (C_out_h, C_l_in, 1, 1)  conv_l2h weight (PyTorch layout)
    gamma, beta : (C_out_h,)         BatchNorm affine parameters
    returns (x_h_out NCHW, None)
    """
    n, ch, h, w = x_h.shape
    _, cl, hl, wl_dim = x_l.shape
    co = w_h2h.shape[0]
    hw = h * w
    low_hw = hl * wl_dim

    tile_p = _pick_tile(hw, w)
    low_tile = tile_p // 4
    grid = (n, hw // tile_p)

    # Free reshapes only (NCHW is already channel-major, spatial-minor).
    xh3 = x_h.reshape(n, ch, hw).astype(jnp.float32)
    xl3 = x_l.reshape(n, cl, low_hw).astype(jnp.float32)
    wh = w_h2h.reshape(co, ch).astype(jnp.float32)       # (Co, Ch) -- no transpose
    wl = w_l2h.reshape(co, cl).astype(jnp.float32)       # (Co, Cl)
    up = _upsample_matrix(tile_p, w)                     # (low_tile, tile_p)

    data_specs = [
        pl.BlockSpec((1, ch, tile_p), lambda ni, ti: (ni, 0, ti)),
        pl.BlockSpec((1, cl, low_tile), lambda ni, ti: (ni, 0, ti)),
        pl.BlockSpec((co, ch), lambda ni, ti: (0, 0)),
        pl.BlockSpec((co, cl), lambda ni, ti: (0, 0)),
        pl.BlockSpec((low_tile, tile_p), lambda ni, ti: (0, 0)),
    ]
    vec_spec = pl.BlockSpec((co, 1), lambda ni, ti: (0, 0))

    # ---- Pass 1: global BN statistics (sum, sum of squares). ----
    sum_x, sum_sq = pl.pallas_call(
        _stats_kernel,
        out_shape=(jax.ShapeDtypeStruct((co, 1), jnp.float32),
                   jax.ShapeDtypeStruct((co, 1), jnp.float32)),
        grid=grid,
        in_specs=data_specs,
        out_specs=(vec_spec, vec_spec),
        compiler_params=pltpu.CompilerParams(
            dimension_semantics=("arbitrary", "arbitrary"),
            vmem_limit_bytes=_VMEM_LIMIT),
    )(xh3, xl3, wh, wl, up)

    # Fold BN (biased variance, training mode) + affine into one per-channel
    # scale/bias so the per-element pass is a single FMA + max.  Accumulators
    # are f32; E[x^2]-E[x]^2 is clamped at 0 to guard tiny cancellation error.
    count = float(n * hw)
    mean = sum_x / count
    var = jnp.maximum(sum_sq / count - mean * mean, 0.0)
    scale = gamma.reshape(co, 1).astype(jnp.float32) * lax.rsqrt(var + BN_EPS)
    bias = beta.reshape(co, 1).astype(jnp.float32) - mean * scale

    # ---- Pass 2: normalize + ReLU, lane-dense stores, fully parallel grid. ----
    out = pl.pallas_call(
        _norm_kernel,
        out_shape=jax.ShapeDtypeStruct((n, co, hw), jnp.float32),
        grid=grid,
        in_specs=data_specs + [vec_spec, vec_spec],
        out_specs=pl.BlockSpec((1, co, tile_p), lambda ni, ti: (ni, 0, ti)),
        compiler_params=pltpu.CompilerParams(
            dimension_semantics=("parallel", "parallel"),
            vmem_limit_bytes=_VMEM_LIMIT),
    )(xh3, xl3, wh, wl, up, scale, bias)

    return out.reshape(n, co, h, w), None  # x_l output of this module is always None


def _reference(x_h, x_l, w_h2h, w_l2h, gamma, beta):
    """Pure-JAX reference of the module forward (for a sanity check)."""
    co = w_h2h.shape[0]
    y_h2h = jnp.einsum('oc,nchw->nohw', w_h2h.reshape(co, -1), x_h)
    y_l2h = jnp.einsum('oc,nchw->nohw', w_l2h.reshape(co, -1), x_l)
    y_l2h = jnp.repeat(jnp.repeat(y_l2h, 2, axis=2), 2, axis=3)
    y = y_h2h + y_l2h
    mean = jnp.mean(y, axis=(0, 2, 3), keepdims=True)
    var = jnp.mean((y - mean) ** 2, axis=(0, 2, 3), keepdims=True)
    y_bn = (y - mean) * lax.rsqrt(var + BN_EPS)
    y_bn = y_bn * gamma.reshape(1, -1, 1, 1) + beta.reshape(1, -1, 1, 1)
    return jnp.maximum(y_bn, 0.0)


if __name__ == "__main__":
    # Module configuration (matches Conv_BN_ACTa0 defaults; kernel_size=1).
    in_channels, out_channels = 8, 8
    alpha_in = alpha_out = 0.5
    c_h_in = in_channels - int(alpha_in * in_channels)        # 4
    c_l_in = int(alpha_in * in_channels)                      # 4
    c_out_h = out_channels - int(alpha_out * out_channels)    # 4

    n, h, w = 2, 16, 16

    key = jax.random.PRNGKey(0)
    k_xh, k_xl, k_wh, k_wl = jax.random.split(key, 4)

    x_h = jax.random.normal(k_xh, (n, c_h_in, h, w), dtype=jnp.float32)
    x_l = jax.random.normal(k_xl, (n, c_l_in, h // 2, w // 2), dtype=jnp.float32)

    # PyTorch Conv2d weight layout (Cout, Cin, 1, 1); BatchNorm2d default init.
    w_h2h = 0.1 * jax.random.normal(k_wh, (c_out_h, c_h_in, 1, 1), dtype=jnp.float32)
    w_l2h = 0.1 * jax.random.normal(k_wl, (c_out_h, c_l_in, 1, 1), dtype=jnp.float32)
    gamma = jnp.ones((c_out_h,), dtype=jnp.float32)
    beta = jnp.zeros((c_out_h,), dtype=jnp.float32)

    x_h_out, x_l_out = conv_bn_act_a0(x_h, x_l, w_h2h, w_l2h, gamma, beta)
    x_h_out = jax.block_until_ready(x_h_out)

    assert x_h_out.shape == (n, c_out_h, h, w)
    assert x_l_out is None
    assert bool(jnp.all(jnp.isfinite(x_h_out)))
    assert bool(jnp.all(x_h_out >= 0.0))   # ReLU output

    # Loose tolerance: absorbs MXU multi-pass-f32 vs XLA default matmul
    # precision differences while still catching layout / upsample bugs.
    ref = _reference(x_h, x_l, w_h2h, w_l2h, gamma, beta)
    max_err = float(jnp.max(jnp.abs(x_h_out - ref)))
    assert bool(jnp.allclose(x_h_out, ref, rtol=3e-2, atol=3e-2)), max_err

    print("KERNEL_OK")
</pallas_src>

<mosaic_0001>
module attributes {stable_mosaic.version = 11 : i64} {
  func.func @_stats_kernel(%arg0: i32, %arg1: i32, %arg2: memref<1x4x256xf32, #tpu.memory_space<vmem>>, %arg3: memref<1x4x64xf32, #tpu.memory_space<vmem>>, %arg4: memref<4x4xf32, #tpu.memory_space<vmem>>, %arg5: memref<4x4xf32, #tpu.memory_space<vmem>>, %arg6: memref<64x256xf32, #tpu.memory_space<vmem>>, %arg7: memref<4x1xf32, #tpu.memory_space<vmem>>, %arg8: memref<4x1xf32, #tpu.memory_space<vmem>>) attributes {dimension_semantics = [#tpu.dimension_semantics<arbitrary>, #tpu.dimension_semantics<arbitrary>], iteration_bounds = array<i64: 2, 1>, scalar_prefetch = 0 : i64, scratch_operands = 0 : i64, tpu.core_type = #tpu.core_type<tc>, window_params = [{transform_indices = @transform_0, window_bounds = array<i64: 1, 4, 256>}, {transform_indices = @transform_1, window_bounds = array<i64: 1, 4, 64>}, {pipeline_mode = #tpu.pipeline_mode<synchronous>, transform_indices = @transform_2, window_bounds = array<i64: 4, 4>}, {pipeline_mode = #tpu.pipeline_mode<synchronous>, transform_indices = @transform_3, window_bounds = array<i64: 4, 4>}, {pipeline_mode = #tpu.pipeline_mode<synchronous>, transform_indices = @transform_4, window_bounds = array<i64: 64, 256>}, {pipeline_mode = #tpu.pipeline_mode<synchronous>, transform_indices = @transform_5, window_bounds = array<i64: 4, 1>}, {pipeline_mode = #tpu.pipeline_mode<synchronous>, transform_indices = @transform_6, window_bounds = array<i64: 4, 1>}]} {
    %c0_i32 = arith.constant 0 : i32
    %0 = arith.cmpi eq, %arg0, %c0_i32 : i32
    %c0_i32_0 = arith.constant 0 : i32
    %1 = arith.cmpi eq, %arg1, %c0_i32_0 : i32
    %2 = arith.andi %0, %1 : i1
    %3 = arith.extui %2 : i1 to i32
    %c0_i32_1 = arith.constant 0 : i32
    %4 = arith.cmpi ne, %3, %c0_i32_1 : i32
    scf.if %4 {
      %cst_25 = arith.constant 0.000000e+00 : f32
      %27 = vector.broadcast %cst_25 : f32 to vector<4x1xf32>
      %c0_26 = arith.constant 0 : index
      %c0_27 = arith.constant 0 : index
      %28 = vector.load %arg7[%c0_26, %c0_27] : memref<4x1xf32, #tpu.memory_space<vmem>>, vector<4x1xf32>
      tpu.vector_store %arg7[%c0_26, %c0_27], %27 {strides = array<i32>} : memref<4x1xf32, #tpu.memory_space<vmem>>, vector<4x1xf32>,
      %cst_28 = arith.constant 0.000000e+00 : f32
      %29 = vector.broadcast %cst_28 : f32 to vector<4x1xf32>
      %c0_29 = arith.constant 0 : index
      %c0_30 = arith.constant 0 : index
      %30 = vector.load %arg8[%c0_29, %c0_30] : memref<4x1xf32, #tpu.memory_space<vmem>>, vector<4x1xf32>
      tpu.vector_store %arg8[%c0_29, %c0_30], %29 {strides = array<i32>} : memref<4x1xf32, #tpu.memory_space<vmem>>, vector<4x1xf32>,
    } else {
    }
    %c0 = arith.constant 0 : index
    %c0_2 = arith.constant 0 : index
    %c0_3 = arith.constant 0 : index
    %5 = vector.load %arg2[%c0, %c0_2, %c0_3] : memref<1x4x256xf32, #tpu.memory_space<vmem>>, vector<1x4x256xf32>
    %6 = vector.shape_cast %5 : vector<1x4x256xf32> to vector<4x256xf32>
    %c0_4 = arith.constant 0 : index
    %c0_5 = arith.constant 0 : index
    %c0_6 = arith.constant 0 : index
    %7 = vector.load %arg3[%c0_4, %c0_5, %c0_6] : memref<1x4x64xf32, #tpu.memory_space<vmem>>, vector<1x4x64xf32>
    %8 = vector.shape_cast %7 : vector<1x4x64xf32> to vector<4x64xf32>
    %c0_7 = arith.constant 0 : index
    %c0_8 = arith.constant 0 : index
    %9 = vector.load %arg4[%c0_7, %c0_8] : memref<4x4xf32, #tpu.memory_space<vmem>>, vector<4x4xf32>
    %c0_9 = arith.constant 0 : index
    %c0_10 = arith.constant 0 : index
    %10 = vector.load %arg5[%c0_9, %c0_10] : memref<4x4xf32, #tpu.memory_space<vmem>>, vector<4x4xf32>
    %c0_11 = arith.constant 0 : index
    %c0_12 = arith.constant 0 : index
    %11 = vector.load %arg6[%c0_11, %c0_12] : memref<64x256xf32, #tpu.memory_space<vmem>>, vector<64x256xf32>
    %cst = arith.constant dense<0.000000e+00> : vector<4x256xf32>
    %12 = tpu.matmul %9, %6, %cst {dimension_numbers = #tpu.dot_dimension_numbers<[1], [0], [0], [1], [0, 0, 1, 1], [], []>} : vector<4x4xf32>, vector<4x256xf32>, vector<4x256xf32> -> vector<4x256xf32>
    %cst_13 = arith.constant dense<0.000000e+00> : vector<4x64xf32>
    %13 = tpu.matmul %10, %8, %cst_13 {dimension_numbers = #tpu.dot_dimension_numbers<[1], [0], [0], [1], [0, 0, 1, 1], [], []>} : vector<4x4xf32>, vector<4x64xf32>, vector<4x64xf32> -> vector<4x64xf32>
    %cst_14 = arith.constant dense<0.000000e+00> : vector<4x256xf32>
    %14 = tpu.matmul %13, %11, %cst_14 {dimension_numbers = #tpu.dot_dimension_numbers<[1], [0], [0], [1], [0, 0, 1, 1], [], []>} : vector<4x64xf32>, vector<64x256xf32>, vector<4x256xf32> -> vector<4x256xf32>
    %15 = arith.addf %12, %14 : vector<4x256xf32>
    %c0_15 = arith.constant 0 : index
    %c0_16 = arith.constant 0 : index
    %16 = vector.load %arg7[%c0_15, %c0_16] : memref<4x1xf32, #tpu.memory_space<vmem>>, vector<4x1xf32>
    %cst_17 = arith.constant dense<0.000000e+00> : vector<4xf32>
    %17 = vector.multi_reduction <add>, %15, %cst_17 [1] : vector<4x256xf32> to vector<4xf32>
    %18 = vector.shape_cast %17 : vector<4xf32> to vector<4x1xf32>
    %19 = arith.addf %16, %18 : vector<4x1xf32>
    %c0_18 = arith.constant 0 : index
    %c0_19 = arith.constant 0 : index
    %20 = vector.load %arg7[%c0_18, %c0_19] : memref<4x1xf32, #tpu.memory_space<vmem>>, vector<4x1xf32>
    tpu.vector_store %arg7[%c0_18, %c0_19], %19 {strides = array<i32>} : memref<4x1xf32, #tpu.memory_space<vmem>>, vector<4x1xf32>,
    %c0_20 = arith.constant 0 : index
    %c0_21 = arith.constant 0 : index
    %21 = vector.load %arg8[%c0_20, %c0_21] : memref<4x1xf32, #tpu.memory_space<vmem>>, vector<4x1xf32>
    %22 = arith.mulf %15, %15 : vector<4x256xf32>
    %cst_22 = arith.constant dense<0.000000e+00> : vector<4xf32>
    %23 = vector.multi_reduction <add>, %22, %cst_22 [1] : vector<4x256xf32> to vector<4xf32>
    %24 = vector.shape_cast %23 : vector<4xf32> to vector<4x1xf32>
    %25 = arith.addf %21, %24 : vector<4x1xf32>
    %c0_23 = arith.constant 0 : index
    %c0_24 = arith.constant 0 : index
    %26 = vector.load %arg8[%c0_23, %c0_24] : memref<4x1xf32, #tpu.memory_space<vmem>>, vector<4x1xf32>
    tpu.vector_store %arg8[%c0_23, %c0_24], %25 {strides = array<i32>} : memref<4x1xf32, #tpu.memory_space<vmem>>, vector<4x1xf32>,
    return
  }
  func.func @transform_0(%arg0: i32, %arg1: i32) -> (i32, i32, i32) {
    %c0_i32 = arith.constant 0 : i32
    %c0_i32_0 = arith.constant 0 : i32
    return %arg0, %c0_i32, %arg1 : i32, i32, i32
  }
  func.func @transform_1(%arg0: i32, %arg1: i32) -> (i32, i32, i32) {
    %c0_i32 = arith.constant 0 : i32
    %c0_i32_0 = arith.constant 0 : i32
    return %arg0, %c0_i32, %arg1 : i32, i32, i32
  }
  func.func @transform_2(%arg0: i32, %arg1: i32) -> (i32, i32) {
    %c0_i32 = arith.constant 0 : i32
    %c0_i32_0 = arith.constant 0 : i32
    %c0_i32_1 = arith.constant 0 : i32
    return %c0_i32, %c0_i32_0 : i32, i32
  }
  func.func @transform_3(%arg0: i32, %arg1: i32) -> (i32, i32) {
    %c0_i32 = arith.constant 0 : i32
    %c0_i32_0 = arith.constant 0 : i32
    %c0_i32_1 = arith.constant 0 : i32
    return %c0_i32, %c0_i32_0 : i32, i32
  }
  func.func @transform_4(%arg0: i32, %arg1: i32) -> (i32, i32) {
    %c0_i32 = arith.constant 0 : i32
    %c0_i32_0 = arith.constant 0 : i32
    %c0_i32_1 = arith.constant 0 : i32
    return %c0_i32, %c0_i32_0 : i32, i32
  }
  func.func @transform_5(%arg0: i32, %arg1: i32) -> (i32, i32) {
    %c0_i32 = arith.constant 0 : i32
    %c0_i32_0 = arith.constant 0 : i32
    %c0_i32_1 = arith.constant 0 : i32
    return %c0_i32, %c0_i32_0 : i32, i32
  }
  func.func @transform_6(%arg0: i32, %arg1: i32) -> (i32, i32) {
    %c0_i32 = arith.constant 0 : i32
    %c0_i32_0 = arith.constant 0 : i32
    %c0_i32_1 = arith.constant 0 : i32
    return %c0_i32, %c0_i32_0 : i32, i32
  }
}

</mosaic_0001>

<llo_original>
// kernel: tpu_custom_call.1
$region0: #{tpu_custom_call.1}
  #allocation0 [shape = 'u32[]', space=smem, size = 0x4, offset = 0x4, fixed_abs, tag = 'smem constant byte address 0x4 - core index']
  #allocation1 [shape = 'u32[72,128]{1,0:T(1,128)}', space=vmem, size = 0x9000, scoped, tag = 'internal scratch']
  %s0 = inlined_call_operand.hbm [shape: f32[2,4,256], index: 0, kind: input, shape index: {}]
  %s1 = inlined_call_operand.hbm [shape: f32[2,4,64], index: 1, kind: input, shape index: {}]
  %s2 = inlined_call_operand.hbm [shape: f32[4,4], index: 2, kind: input, shape index: {}]
  %s3 = inlined_call_operand.hbm [shape: f32[4,4], index: 3, kind: input, shape index: {}]
  %s4 = inlined_call_operand.hbm [shape: f32[64,256], index: 4, kind: input, shape index: {}]
  %s5 = inlined_call_operand.vmem [shape: f32[4,1], index: 5, kind: output, shape index: {0}]
  %s6 = inlined_call_operand.vmem [shape: f32[4,1], index: 6, kind: output, shape index: {1}]
  %7 = xla_tuple %s5, %s6
  %s8 = sld [smem:[#allocation0]]
  $region85: #{tpu_custom_call.1} parent=0
    _
  %s10 = ssub.s32 1, %s8
  %s11 = scalar_select 0, %s10, %s8
  $region1: #{tpu_custom_call.1} parent=0
    #allocation2 [shape = 'u8[8192]{0}', space=vmem, size = 0x2000, scoped, tag = 'input window, operand 0']
    #allocation3 [shape = 's32[2]{0}', space=sflag, size = 0x8, scoped, tag = 'scoped memory for tpu_custom_call.1']
    #allocation4 [shape = 'u8[4096]{0}', space=vmem, size = 0x1000, scoped, tag = 'input window, operand 1']
    #allocation5 [shape = 's32[2]{0}', space=sflag, size = 0x8, scoped, tag = 'scoped memory for tpu_custom_call.1']
    #allocation6 [shape = 'u8[2048]{0}', space=vmem, size = 0x800, scoped, tag = 'input window, operand 2, single buffered']
    #allocation7 [shape = 'u8[2048]{0}', space=vmem, size = 0x800, scoped, tag = 'input window, operand 3, single buffered']
    #allocation8 [shape = 's32[1]{0}', space=sflag, size = 0x4, scoped, tag = 'scoped memory for tpu_custom_call.1']
    #allocation9 [shape = 'u8[65536]{0}', space=vmem, size = 0x10000, scoped, tag = 'input window, operand 4, single buffered']
    %12 = vsyncpa [#allocation3], 0
    %s13 = scalar_lea.sflag [#allocation3], 1
    %14 = vsyncpa %s13, 0
    %15 = vsyncpa [#allocation5], 0
    %s16 = scalar_lea.sflag [#allocation5], 1
    %17 = vsyncpa %s16, 0
    %18 = vsyncpa [#allocation8], 0
    loop: start=0, step=1, limit=4
    $region2: #{tpu_custom_call.1} parent=1 // loop_pre_header
      _
    $region3: #{tpu_custom_call.1} parent=1 // loop_header
      %s20 = sphi 0, %s24
      %p21 = scmp.ge.s32.totalorder %s20, 4
      %s27 = sphi 0, %s39
      %s28 = sphi 0, %s35
      %s29 = sphi 0, %s27
      %s30 = sphi 0, %s28
      %s31 = sphi 0, %s29
      %s32 = sphi 0, %s30
      %s44 = sphi 0, %s46
      %s47 = sphi 0, %s44
      %s48 = sphi 0, %s47
      %s64 = sphi 0, %s48
      %s72 = sphi 0, %s74
      %s75 = sphi 0, %s72
      %s76 = sphi 0, %s75
      %s92 = sphi 0, %s76
      %s96 = sphi 0, %s96
      %s98 = sphi 0, %s96
      %s99 = sphi 0, %s98
      %s113 = sphi 0, %s99
      %s117 = sphi 0, %s117
      %s119 = sphi 0, %s117
      %s120 = sphi 0, %s119
      %s134 = sphi 0, %s120
      %s138 = sphi 0, %s138
      %s140 = sphi 0, %s138
      %s141 = sphi 0, %s140
      %s155 = sphi 0, %s141
      %s159 = sphi 0, %s159
      %s161 = sphi 0, %s159
      %s162 = sphi 0, %s161
      %s176 = sphi 0, %s162
      %s180 = sphi 0, %s180
      %s182 = sphi 0, %s180
      %s183 = sphi 0, %s182
      %s197 = sphi 0, %s183
    $region4: #{tpu_custom_call.1} parent=1 // loop_header_branch
      %23 = sbr.rel (%p21) target = $region8
    $region5: #{tpu_custom_call.1} parent=1 // loop_body
      %s25 = ssub.s32 %s20, 1
      %s26 = ssub.s32 %s20, 2
      %s33 = sadd.s32 1, %s28
      %p34 = scmp.ge.s32.totalorder %s33, 1
      %s35 = scalar_select %p34, 0, %s33
      %s36 = sadd.s32 1, %s27
      %s37 = scalar_select %p34, %s36, %s27
      %p38 = scmp.ge.s32.totalorder %s37, 2
      %s39 = scalar_select %p38, 0, %s37
      %s40 = ssub.s32 %s27, %s39
      %s41 = ssub.s32 %s28, %s35
      %s42 = sor.u32 %s40, %s41
      %p43 = scmp.eq.s32.totalorder %s42, 0
      %s45 = sadd.s32 %s44, 1
      %s46 = scalar_select %p43, %s44, %s45
      %p49 = pneg %p43
      %p50 = scmp.eq.s32.totalorder %s20, 1
      %p51 = por %p49, %p50
      %p52 = scmp.ne.s32.totalorder %s44, %s47
      %p53 = scmp.eq.s32.totalorder %s20, 0
      %p54 = por %p52, %p53
      %p55 = scmp.ne.s32.totalorder %s44, %s47
      %p56 = scmp.eq.s32.totalorder %s25, 1
      %p57 = por %p55, %p56
      %p58 = scmp.ne.s32.totalorder %s47, %s48
      %p59 = scmp.eq.s32.totalorder %s25, 0
      %p60 = por %p58, %p59
      %p61 = scmp.ne.s32.totalorder %s47, %s48
      %p62 = scmp.eq.s32.totalorder %s26, 1
      %p63 = por %p61, %p62
      %p65 = scmp.ne.s32.totalorder %s48, %s64
      %p66 = scmp.eq.s32.totalorder %s26, 0
      %p67 = por %p65, %p66
      %s68 = ssub.s32 %s27, %s39
      %s69 = ssub.s32 %s28, %s35
      %s70 = sor.u32 %s68, %s69
      %p71 = scmp.eq.s32.totalorder %s70, 0
      %s73 = sadd.s32 %s72, 1
      %s74 = scalar_select %p71, %s72, %s73
      %p77 = pneg %p71
      %p78 = scmp.eq.s32.totalorder %s20, 1
      %p79 = por %p77, %p78
      %p80 = scmp.ne.s32.totalorder %s72, %s75
      %p81 = scmp.eq.s32.totalorder %s20, 0
      %p82 = por %p80, %p81
      %p83 = scmp.ne.s32.totalorder %s72, %s75
      %p84 = scmp.eq.s32.totalorder %s25, 1
      %p85 = por %p83, %p84
      %p86 = scmp.ne.s32.totalorder %s75, %s76
      %p87 = scmp.eq.s32.totalorder %s25, 0
      %p88 = por %p86, %p87
      %p89 = scmp.ne.s32.totalorder %s75, %s76
      %p90 = scmp.eq.s32.totalorder %s26, 1
      %p91 = por %p89, %p90
      %p93 = scmp.ne.s32.totalorder %s76, %s92
      %p94 = scmp.eq.s32.totalorder %s26, 0
      %p95 = por %p93, %p94
      %s97 = sadd.s32 %s96, 1
      %p100 = scmp.eq.s32.totalorder %s20, 1
      %p101 = scmp.ne.s32.totalorder %s96, %s98
      %p102 = scmp.eq.s32.totalorder %s20, 0
      %p103 = por %p101, %p102
      %p104 = scmp.ne.s32.totalorder %s96, %s98
      %p105 = scmp.eq.s32.totalorder %s25, 1
      %p106 = por %p104, %p105
      %p107 = scmp.ne.s32.totalorder %s98, %s99
      %p108 = scmp.eq.s32.totalorder %s25, 0
      %p109 = por %p107, %p108
      %p110 = scmp.ne.s32.totalorder %s98, %s99
      %p111 = scmp.eq.s32.totalorder %s26, 1
      %p112 = por %p110, %p111
      %p114 = scmp.ne.s32.totalorder %s99, %s113
      %p115 = scmp.eq.s32.totalorder %s26, 0
      %p116 = por %p114, %p115
      %s118 = sadd.s32 %s117, 1
      %p121 = scmp.eq.s32.totalorder %s20, 1
      %p122 = scmp.ne.s32.totalorder %s117, %s119
      %p123 = scmp.eq.s32.totalorder %s20, 0
      %p124 = por %p122, %p123
      %p125 = scmp.ne.s32.totalorder %s117, %s119
      %p126 = scmp.eq.s32.totalorder %s25, 1
      %p127 = por %p125, %p126
      %p128 = scmp.ne.s32.totalorder %s119, %s120
      %p129 = scmp.eq.s32.totalorder %s25, 0
      %p130 = por %p128, %p129
      %p131 = scmp.ne.s32.totalorder %s119, %s120
      %p132 = scmp.eq.s32.totalorder %s26, 1
      %p133 = por %p131, %p132
      %p135 = scmp.ne.s32.totalorder %s120, %s134
      %p136 = scmp.eq.s32.totalorder %s26, 0
      %p137 = por %p135, %p136
      %s139 = sadd.s32 %s138, 1
      %p142 = scmp.eq.s32.totalorder %s20, 1
      %p143 = scmp.ne.s32.totalorder %s138, %s140
      %p144 = scmp.eq.s32.totalorder %s20, 0
      %p145 = por %p143, %p144
      %p146 = scmp.ne.s32.totalorder %s138, %s140
      %p147 = scmp.eq.s32.totalorder %s25, 1
      %p148 = por %p146, %p147
      %p149 = scmp.ne.s32.totalorder %s140, %s141
      %p150 = scmp.eq.s32.totalorder %s25, 0
      %p151 = por %p149, %p150
      %p152 = scmp.ne.s32.totalorder %s140, %s141
      %p153 = scmp.eq.s32.totalorder %s26, 1
      %p154 = por %p152, %p153
      %p156 = scmp.ne.s32.totalorder %s141, %s155
      %p157 = scmp.eq.s32.totalorder %s26, 0
      %p158 = por %p156, %p157
      %s160 = sadd.s32 %s159, 1
      %p163 = scmp.eq.s32.totalorder %s20, 1
      %p164 = scmp.ne.s32.totalorder %s159, %s161
      %p165 = scmp.eq.s32.totalorder %s20, 0
      %p166 = por %p164, %p165
      %p167 = scmp.ne.s32.totalorder %s159, %s161
      %p168 = scmp.eq.s32.totalorder %s25, 1
      %p169 = por %p167, %p168
      %p170 = scmp.ne.s32.totalorder %s161, %s162
      %p171 = scmp.eq.s32.totalorder %s25, 0
      %p172 = por %p170, %p171
      %p173 = scmp.ne.s32.totalorder %s161, %s162
      %p174 = scmp.eq.s32.totalorder %s26, 1
      %p175 = por %p173, %p174
      %p177 = scmp.ne.s32.totalorder %s162, %s176
      %p178 = scmp.eq.s32.totalorder %s26, 0
      %p179 = por %p177, %p178
      %s181 = sadd.s32 %s180, 1
      %p184 = scmp.eq.s32.totalorder %s20, 1
      %p185 = scmp.ne.s32.totalorder %s180, %s182
      %p186 = scmp.eq.s32.totalorder %s20, 0
      %p187 = por %p185, %p186
      %p188 = scmp.ne.s32.totalorder %s180, %s182
      %p189 = scmp.eq.s32.totalorder %s25, 1
      %p190 = por %p188, %p189
      %p191 = scmp.ne.s32.totalorder %s182, %s183
      %p192 = scmp.eq.s32.totalorder %s25, 0
      %p193 = por %p191, %p192
      %p194 = scmp.ne.s32.totalorder %s182, %s183
      %p195 = scmp.eq.s32.totalorder %s26, 1
      %p196 = por %p194, %p195
      %p198 = scmp.ne.s32.totalorder %s183, %s197
      %p199 = scmp.eq.s32.totalorder %s26, 0
      %p200 = por %p198, %p199
      %p201 = scmp.le.s32.totalorder 1, %s20
      %p202 = scmp.lt.s32.totalorder %s20, 3
      %p203 = pnand %p201, %p202
      %p204 = pneg %p203
      // Predicated region
      $region9: #{tpu_custom_call.1} parent=5 // pred_check
        _
      $region10: #{tpu_custom_call.1} parent=5 // pred_check_branch
        %206 = sbr.rel (%p203) target = $region12
      $region11: #{tpu_custom_call.1} parent=5 // pred_region
        %s207 = ssub.s32 %s20, 1
        // Predicated region
        $region13: #{tpu_custom_call.1} parent=11 // pred_check
          %p208 = pneg %p109
        $region14: #{tpu_custom_call.1} parent=11 // pred_check_branch
          %210 = sbr.rel (%p208) target = $region16
        $region15: #{tpu_custom_call.1} parent=11 // pred_region
          %212 = vsyncadd [#allocation5], 0
          %s214 = sshll.u32 %s2, 4
          %s215 = int_to_ptr.hbm [resolvable:$true] %s214
          %s216 = sshll.u32 [#allocation6], 4
          %s217 = int_to_ptr.vmem [resolvable:$true] %s216
          %219 = dma.hbm_to_vmem [thread:$0]  %s215, 64, %s217, [#allocation5]
        $region16: #{tpu_custom_call.1} parent=11 // pred_fallthru
          _
        // Predicated region
        $region17: #{tpu_custom_call.1} parent=11 // pred_check
          %p220 = pneg %p130
        $region18: #{tpu_custom_call.1} parent=11 // pred_check_branch
          %222 = sbr.rel (%p220) target = $region20
        $region19: #{tpu_custom_call.1} parent=11 // pred_region
          %224 = vsyncadd [#allocation8], 0
          %s226 = sshll.u32 %s3, 4
          %s227 = int_to_ptr.hbm [resolvable:$true] %s226
          %s228 = sshll.u32 [#allocation7], 4
          %s229 = int_to_ptr.vmem [resolvable:$true] %s228
          %231 = dma.hbm_to_vmem [thread:$0]  %s227, 64, %s229, [#allocation8]
        $region20: #{tpu_custom_call.1} parent=11 // pred_fallthru
          _
        // Predicated region
        $region21: #{tpu_custom_call.1} parent=11 // pred_check
          %p232 = pneg %p151
        $region22: #{tpu_custom_call.1} parent=11 // pred_check_branch
          %234 = sbr.rel (%p232) target = $region24
        $region23: #{tpu_custom_call.1} parent=11 // pred_region
          %236 = vsyncadd [#allocation8], 0
          %s237 = sshll.u32 %s4, 4
          %s238 = int_to_ptr.hbm [resolvable:$true] %s237
          %s239 = sshll.u32 [#allocation9], 4
          %s240 = int_to_ptr.vmem [resolvable:$true] %s239
          %245 = dma.hbm_to_vmem [thread:$0]  %s238, 2048, %s240, [#allocation8], 256, 256, 16
        $region24: #{tpu_custom_call.1} parent=11 // pred_fallthru
          _
      $region12: #{tpu_custom_call.1} parent=5 // pred_fallthru
        _
      %p246 = scmp.lt.s32.totalorder %s20, 2
      // Predicated region
      $region25: #{tpu_custom_call.1} parent=5 // pred_check
        %p247 = pneg %p246
      $region26: #{tpu_custom_call.1} parent=5 // pred_check_branch
        %249 = sbr.rel (%p247) target = $region28
      $region27: #{tpu_custom_call.1} parent=5 // pred_region
        // Predicated region
        $region29: #{tpu_custom_call.1} parent=27 // pred_check
          %p250 = pneg %p54
        $region30: #{tpu_custom_call.1} parent=27 // pred_check_branch
          %252 = sbr.rel (%p250) target = $region32
        $region31: #{tpu_custom_call.1} parent=27 // pred_region
          %s253 = sand.u32 %s44, 1
          %s254 = scalar_lea.sflag [#allocation3], %s253
          %s255 = sand.u32 %s44, 1
          %s256 = smul.addr %s255, 8
          %s257 = scalar_lea.vmem [#allocation2], %s256
          %s258 = smul.u32 2, %s28
          %260 = vsyncadd %s254, 0
          %s261 = smul.addr %s27, 2
          %s262 = sadd.s32 %s258, %s261
          %s263 = smul.addr %s262, 4
          %s264 = scalar_lea.hbm %s0, %s263
          %s266 = sshll.u32 %s264, 4
          %s267 = int_to_ptr.hbm [resolvable:$true] %s266
          %s268 = sshll.u32 %s257, 4
          %s269 = int_to_ptr.vmem [resolvable:$true] %s268
          %271 = dma.hbm_to_vmem [thread:$0]  %s267, 128, %s269, %s254
        $region32: #{tpu_custom_call.1} parent=27 // pred_fallthru
          _
        // Predicated region
        $region33: #{tpu_custom_call.1} parent=27 // pred_check
          %p272 = pneg %p82
        $region34: #{tpu_custom_call.1} parent=27 // pred_check_branch
          %274 = sbr.rel (%p272) target = $region36
        $region35: #{tpu_custom_call.1} parent=27 // pred_region
          %s275 = sand.u32 %s20, 1
          %s276 = scalar_lea.sflag [#allocation5], %s275
          %s277 = sand.u32 %s72, 1
          %s278 = smul.addr %s277, 4
          %s279 = scalar_lea.vmem [#allocation4], %s278
          %281 = vsyncadd %s276, 0
          %s282 = sadd.s32 %s28, %s27
          %s283 = smul.addr %s282, 4
          %s284 = scalar_lea.hbm %s1, %s283
          %s286 = sshll.u32 %s284, 4
          %s287 = int_to_ptr.hbm [resolvable:$true] %s286
          %s288 = sshll.u32 %s279, 4
          %s289 = int_to_ptr.vmem [resolvable:$true] %s288
          %291 = dma.hbm_to_vmem [thread:$0]  %s287, 64, %s289, %s276
        $region36: #{tpu_custom_call.1} parent=27 // pred_fallthru
          _
      $region28: #{tpu_custom_call.1} parent=5 // pred_fallthru
        _
      %p292 = scmp.le.s32.totalorder 1, %s20
      %p293 = scmp.lt.s32.totalorder %s20, 3
      %p294 = pnand %p292, %p293
      %p295 = pneg %p294
      // Predicated region
      $region37: #{tpu_custom_call.1} parent=5 // pred_check
        _
      $region38: #{tpu_custom_call.1} parent=5 // pred_check_branch
        %297 = sbr.rel (%p294) target = $region40
      $region39: #{tpu_custom_call.1} parent=5 // pred_region
        %s298 = ssub.s32 %s20, 1
        %s299 = sand.u32 %s47, 1
        %s300 = scalar_lea.sflag [#allocation3], %s299
        %s301 = sand.u32 %s47, 1
        %s302 = smul.addr %s301, 8
        %s303 = scalar_lea.vmem [#allocation2], %s302
        // Predicated region
        $region41: #{tpu_custom_call.1} parent=39 // pred_check
          %p304 = pneg %p60
        $region42: #{tpu_custom_call.1} parent=39 // pred_check_branch
          %306 = sbr.rel (%p304) target = $region44
        $region43: #{tpu_custom_call.1} parent=39 // pred_region
          %308 = dma.done %s300, 128
        $region44: #{tpu_custom_call.1} parent=39 // pred_fallthru
          _
        %s309 = sand.u32 %s25, 1
        %s310 = scalar_lea.sflag [#allocation5], %s309
        %s311 = sand.u32 %s75, 1
        %s312 = smul.addr %s311, 4
        %s313 = scalar_lea.vmem [#allocation4], %s312
        // Predicated region
        $region45: #{tpu_custom_call.1} parent=39 // pred_check
          %p314 = pneg %p88
        $region46: #{tpu_custom_call.1} parent=39 // pred_check_branch
          %316 = sbr.rel (%p314) target = $region48
        $region47: #{tpu_custom_call.1} parent=39 // pred_region
          %318 = dma.done %s310, 64
        $region48: #{tpu_custom_call.1} parent=39 // pred_fallthru
          _
        // Predicated region
        $region49: #{tpu_custom_call.1} parent=39 // pred_check
          %p319 = pneg %p109
        $region50: #{tpu_custom_call.1} parent=39 // pred_check_branch
          %321 = sbr.rel (%p319) target = $region52
        $region51: #{tpu_custom_call.1} parent=39 // pred_region
          %323 = dma.done [#allocation5], 64
        $region52: #{tpu_custom_call.1} parent=39 // pred_fallthru
          _
        // Predicated region
        $region53: #{tpu_custom_call.1} parent=39 // pred_check
          %p324 = pneg %p130
        $region54: #{tpu_custom_call.1} parent=39 // pred_check_branch
          %326 = sbr.rel (%p324) target = $region56
        $region55: #{tpu_custom_call.1} parent=39 // pred_region
          %328 = dma.done [#allocation8], 64
        $region56: #{tpu_custom_call.1} parent=39 // pred_fallthru
          _
        // Predicated region
        $region57: #{tpu_custom_call.1} parent=39 // pred_check
          %p329 = pneg %p151
        $region58: #{tpu_custom_call.1} parent=39 // pred_check_branch
          %331 = sbr.rel (%p329) target = $region60
        $region59: #{tpu_custom_call.1} parent=39 // pred_region
          %333 = dma.done [#allocation8], 2048
        $region60: #{tpu_custom_call.1} parent=39 // pred_fallthru
          _
        %s334 = sand.u32 %s47, 1
        %s335 = scalar_lea.sflag [#allocation3], %s334
        %s336 = sand.u32 %s47, 1
        %s337 = smul.addr %s336, 8
        %s338 = scalar_lea.vmem [#allocation2], %s337
        %p339 = pneg %p60
        %p340 = pneg %p57
        %s341 = sand.u32 %s25, 1
        %s342 = scalar_lea.sflag [#allocation5], %s341
        %s343 = sand.u32 %s75, 1
        %s344 = smul.addr %s343, 4
        %s345 = scalar_lea.vmem [#allocation4], %s344
        %p346 = pneg %p88
        %p347 = pneg %p85
        %p348 = pneg %p109
        %p349 = pneg %p106
        %p350 = pneg %p130
        %p351 = pneg %p127
        %p352 = pneg %p151
        %p353 = pneg %p148
        %p354 = pneg %p172
        %p355 = pneg %p169
        %p356 = pneg %p193
        %p357 = pneg %p190
        %s358 = smul.u32 2, %s30
        %p359 = scmp.eq.s32.totalorder %s29, 0
        %p360 = scmp.eq.s32.totalorder %s30, 0
        %p361 = pnand %p359, %p360
        %p362 = pneg %p361
        // Predicated region
        $region61: #{tpu_custom_call.1} parent=39 // pred_check
          _
        $region62: #{tpu_custom_call.1} parent=39 // pred_check_branch
          %364 = sbr.rel (%p361) target = $region64
        $region63: #{tpu_custom_call.1} parent=39 // pred_region
          %vm365 = vcmask 3072
          %366 = vst.msk [vmem:[%s5] sm:$0xf] %vm365, 0.0
          %367 = vst.msk [vmem:[%s6] sm:$0xf] %vm365, 0.0
        $region64: #{tpu_custom_call.1} parent=39 // pred_fallthru
          _
        %v368 = vld [vmem:[%s303] sm:$0xff]
        %v369 = vld [vmem:[%s313] sm:$0xf]
        %v370 = vld [vmem:[#allocation6] sm:$0xf]
        %v371 = vld [vmem:[#allocation7] sm:$0xf]
        %v372 = vld [vmem:[#allocation9] sm:$0xff]
        %v373 = vld [vmem:[#allocation9 + $0x8] sm:$0xff]
        %v374 = vld [vmem:[#allocation9 + $0x10] sm:$0xff]
        %v375 = vld [vmem:[#allocation9 + $0x18] sm:$0xff]
        %v376 = vld [vmem:[#allocation9 + $0x20] sm:$0xff]
        %v377 = vld [vmem:[#allocation9 + $0x28] sm:$0xff]
        %v378 = vld [vmem:[#allocation9 + $0x30] sm:$0xff]
        %v379 = vld [vmem:[#allocation9 + $0x38] sm:$0xff]
        %v380 = vld [vmem:[#allocation9 + $0x40] sm:$0xff]
        %v381 = vld [vmem:[#allocation9 + $0x48] sm:$0xff]
        %v382 = vld [vmem:[#allocation9 + $0x50] sm:$0xff]
        %v383 = vld [vmem:[#allocation9 + $0x58] sm:$0xff]
        %v384 = vld [vmem:[#allocation9 + $0x60] sm:$0xff]
        %v385 = vld [vmem:[#allocation9 + $0x68] sm:$0xff]
        %v386 = vld [vmem:[#allocation9 + $0x70] sm:$0xff]
        %v387 = vld [vmem:[#allocation9 + $0x78] sm:$0xff]
        %vm388 = vcmask 31744
        %v390 = vsel %vm388, %v371, 0
        %vm392 = vcmask 1043456
        %v394 = vsel %vm392, %v369, 0
        %396 = vmatpush.msra.mxu0 0.0
        %397 = vmatpush.msra.mxu0 0.0
        %398 = vmatpush.msra.mxu0 0.0
        %399 = vmatpush.msra.mxu0 0.0
        %400 = vmatpush.msra.mxu0 0.0
        %401 = vmatpush.msra.mxu0 0.0
        %402 = vmatpush.msra.mxu0 0.0
        %403 = vmatpush.msra.mxu0 0.0
        %404 = vmatpush.msra.mxu0 0.0
        %405 = vmatpush.msra.mxu0 0.0
        %406 = vmatpush.msra.mxu0 0.0
        %407 = vmatpush.msra.mxu0 0.0
        %408 = vmatpush.msra.mxu0 0.0
        %409 = vmatpush.msra.mxu0 0.0
        %410 = vmatpush.msra.mxu0 0.0
        %411 = vmatpush.msra.mxu0 %v394
        %412 = vmatmul.f32.gmra.mxu0 %v390
        %v413 = vpop.f32.mrf.mxu0
        %v414 = vadd.f32 0.0, %v413
        %415 = vdwg.mxu0
        %vm416 = vcmask 523264
        %v418 = vsel %vm416, %v414, 0
        %420 = vmatpush.msra.mxu0 0.0
        %421 = vmatpush.msra.mxu0 0.0
        %422 = vmatpush.msra.mxu0 0.0
        %423 = vmatpush.msra.mxu0 0.0
        %424 = vmatpush.msra.mxu0 0.0
        %425 = vmatpush.msra.mxu0 0.0
        %426 = vmatpush.msra.mxu0 0.0
        %427 = vmatpush.msra.mxu0 0.0
        %428 = vmatpush.msra.mxu0 %v386
        %429 = vmatpush.msra.mxu0 %v384
        %430 = vmatpush.msra.mxu0 %v382
        %431 = vmatpush.msra.mxu0 %v380
        %432 = vmatpush.msra.mxu0 %v378
        %433 = vmatpush.msra.mxu0 %v376
        %434 = vmatpush.msra.mxu0 %v374
        %435 = vmatpush.msra.mxu0 %v372
        %436 = vmatmul.f32.gmra.mxu0 %v418
        %v437 = vpop.f32.mrf.mxu0
        %v438 = vadd.f32 0.0, %v437
        %439 = vdwg.mxu0
        %440 = vmatpush.msra.mxu0 0.0
        %441 = vmatpush.msra.mxu0 0.0
        %442 = vmatpush.msra.mxu0 0.0
        %443 = vmatpush.msra.mxu0 0.0
        %444 = vmatpush.msra.mxu0 0.0
        %445 = vmatpush.msra.mxu0 0.0
        %446 = vmatpush.msra.mxu0 0.0
        %447 = vmatpush.msra.mxu0 0.0
        %448 = vmatpush.msra.mxu0 %v387
        %449 = vmatpush.msra.mxu0 %v385
        %450 = vmatpush.msra.mxu0 %v383
        %451 = vmatpush.msra.mxu0 %v381
        %452 = vmatpush.msra.mxu0 %v379
        %453 = vmatpush.msra.mxu0 %v377
        %454 = vmatpush.msra.mxu0 %v375
        %455 = vmatpush.msra.mxu0 %v373
        %456 = vmatmul.f32.gmra.mxu0 %v418
        %v457 = vpop.f32.mrf.mxu0
        %v458 = vadd.f32 0.0, %v457
        %459 = vdwg.mxu0
        %461 = vst [vmem:[#allocation1] ss:$2 sm:$0xff] %v368
        %v462 = vld.sshfl [vmem:[#allocation1] sm:$0xff pattern:$0x75316420]
        %v463 = vld.sshfl [vmem:[#allocation1 + $0x8] sm:$0xff pattern:$0x75316420]
        %v465 = vsel %vm388, %v370, 0
        %v467 = vsel %vm392, %v462, 0
        %v469 = vsel %vm392, %v463, 0
        %471 = vmatpush.msra.mxu0 0.0
        %472 = vmatpush.msra.mxu0 0.0
        %473 = vmatpush.msra.mxu0 0.0
        %474 = vmatpush.msra.mxu0 0.0
        %475 = vmatpush.msra.mxu0 0.0
        %476 = vmatpush.msra.mxu0 0.0
        %477 = vmatpush.msra.mxu0 0.0
        %478 = vmatpush.msra.mxu0 0.0
        %479 = vmatpush.msra.mxu0 0.0
        %480 = vmatpush.msra.mxu0 0.0
        %481 = vmatpush.msra.mxu0 0.0
        %482 = vmatpush.msra.mxu0 0.0
        %483 = vmatpush.msra.mxu0 0.0
        %484 = vmatpush.msra.mxu0 0.0
        %485 = vmatpush.msra.mxu0 0.0
        %486 = vmatpush.msra.mxu0 %v467
        %487 = vmatmul.f32.gmra.mxu0 %v465
        %v488 = vpop.f32.mrf.mxu0
        %v489 = vadd.f32 %v438, %v488
        %490 = vdwg.mxu0
        %491 = vmatpush.msra.mxu0 0.0
        %492 = vmatpush.msra.mxu0 0.0
        %493 = vmatpush.msra.mxu0 0.0
        %494 = vmatpush.msra.mxu0 0.0
        %495 = vmatpush.msra.mxu0 0.0
        %496 = vmatpush.msra.mxu0 0.0
        %497 = vmatpush.msra.mxu0 0.0
        %498 = vmatpush.msra.mxu0 0.0
        %499 = vmatpush.msra.mxu0 0.0
        %500 = vmatpush.msra.mxu0 0.0
        %501 = vmatpush.msra.mxu0 0.0
        %502 = vmatpush.msra.mxu0 0.0
        %503 = vmatpush.msra.mxu0 0.0
        %504 = vmatpush.msra.mxu0 0.0
        %505 = vmatpush.msra.mxu0 0.0
        %506 = vmatpush.msra.mxu0 %v469
        %507 = vmatmul.f32.gmra.mxu0 %v465
        %v508 = vpop.f32.mrf.mxu0
        %v509 = vadd.f32 %v458, %v508
        %510 = vdwg.mxu0
        %v511 = vld [vmem:[%s5] sm:$0xf]
        %v512 = vsel %vm392, %v489, 0.0
        %v513 = vsel %vm392, %v509, 0.0
        %v514 = vadd.f32 %v512, %v513
        %515 = vadd.xlane.f32.xlu0 %v514
        %v516 = vpop.xlane.xlu0 %515
        %v517 = vadd.f32 %v511, %v516
        %vm518 = vcmask 3072
        %519 = vst.msk [vmem:[%s5] sm:$0xf] %vm518, %v517
        %v520 = vld [vmem:[%s6] sm:$0xf]
        %v521 = vmul.f32 %v489, %v489
        %v522 = vmul.f32 %v509, %v509
        %v523 = vsel %vm392, %v521, 0.0
        %v524 = vsel %vm392, %v522, 0.0
        %v525 = vadd.f32 %v523, %v524
        %526 = vadd.xlane.f32.xlu0 %v525
        %v527 = vpop.xlane.xlu0 %526
        %v528 = vadd.f32 %v520, %v527
        %529 = vst.msk [vmem:[%s6] sm:$0xf] %vm518, %v528
        // Predicated region
        $region65: #{tpu_custom_call.1} parent=39 // pred_check
          %p530 = pneg %p169
        $region66: #{tpu_custom_call.1} parent=39 // pred_check_branch
          %532 = sbr.rel (%p530) target = $region68
        $region67: #{tpu_custom_call.1} parent=39 // pred_region
          _
        $region68: #{tpu_custom_call.1} parent=39 // pred_fallthru
          _
        // Predicated region
        $region69: #{tpu_custom_call.1} parent=39 // pred_check
          %p533 = pneg %p190
        $region70: #{tpu_custom_call.1} parent=39 // pred_check_branch
          %535 = sbr.rel (%p533) target = $region72
        $region71: #{tpu_custom_call.1} parent=39 // pred_region
          _
        $region72: #{tpu_custom_call.1} parent=39 // pred_fallthru
          _
        // Predicated region
        $region73: #{tpu_custom_call.1} parent=39 // pred_check
          %p536 = pneg %p169
        $region74: #{tpu_custom_call.1} parent=39 // pred_check_branch
          %538 = sbr.rel (%p536) target = $region76
        $region75: #{tpu_custom_call.1} parent=39 // pred_region
          _
        $region76: #{tpu_custom_call.1} parent=39 // pred_fallthru
          _
        // Predicated region
        $region77: #{tpu_custom_call.1} parent=39 // pred_check
          %p539 = pneg %p190
        $region78: #{tpu_custom_call.1} parent=39 // pred_check_branch
          %541 = sbr.rel (%p539) target = $region80
        $region79: #{tpu_custom_call.1} parent=39 // pred_region
          _
        $region80: #{tpu_custom_call.1} parent=39 // pred_fallthru
          _
      $region40: #{tpu_custom_call.1} parent=5 // pred_fallthru
        _
      %p542 = scmp.le.s32.totalorder 2, %s20
      // Predicated region
      $region81: #{tpu_custom_call.1} parent=5 // pred_check
        %p543 = pneg %p542
      $region82: #{tpu_custom_call.1} parent=5 // pred_check_branch
        %545 = sbr.rel (%p543) target = $region84
      $region83: #{tpu_custom_call.1} parent=5 // pred_region
        %s546 = ssub.s32 %s20, 2
      $region84: #{tpu_custom_call.1} parent=5 // pred_fallthru
        _
    $region6: #{tpu_custom_call.1} parent=1 // loop_footer
      %s24 = sadd.s32 1, %s20
    $region7: #{tpu_custom_call.1} parent=1 // loop_footer_branch
      %19 = sbr.rel target = $region3
    $region8: #{tpu_custom_call.1} parent=1 // loop_exit
      _
    %547 = vsyncpa [#allocation3], 1
    %s548 = scalar_lea.sflag [#allocation3], 1
    %549 = vsyncpa %s548, 1
    %550 = vsyncpa [#allocation5], 1
    %s551 = scalar_lea.sflag [#allocation5], 1
    %552 = vsyncpa %s551, 1
    %553 = vsyncpa [#allocation8], 1

</llo_original>
